<compile_context>
chip_gen: v5e
topology: v5e:2x2
jax: 0.10.0
libtpu: 0.0.40
codegen_flags: <defaults>
</compile_context>

<pallas_src>
import functools
import math

import jax
import jax.numpy as jnp
from jax.experimental import pallas as pl
from jax.experimental.pallas import tpu as pltpu

# ----------------------------- small config (consistent with LlamaConfig) ----
DIM = 32
N_HEADS = 4
N_KV_HEADS = 2
HEAD_DIM = DIM // N_HEADS                 # 8
N_REP = N_HEADS // N_KV_HEADS             # 2
MULTIPLE_OF = 16
NORM_EPS = 1e-5
ROPE_THETA = 10000.0
BATCH = 2
SEQLEN = 8


def _ffn_hidden_dim(dim, multiple_of):
    hidden = 4 * dim
    hidden = int(2 * hidden / 3)
    return multiple_of * ((hidden + multiple_of - 1) // multiple_of)


FFN_HIDDEN = _ffn_hidden_dim(DIM, MULTIPLE_OF)            # 96
QK_WIDTH = (N_HEADS + N_KV_HEADS) * HEAD_DIM              # 48 (rotated columns)
QKV_WIDTH = (N_HEADS + 2 * N_KV_HEADS) * HEAD_DIM         # 64
QKV_PAD = 128                                             # lane-dense QKV matmul width
W13_PAD = 256                                             # [w1 | 0 | w3 | 0]
W3_OFF = 128                                              # w3 starts at a lane-tile boundary
K_OFF = N_HEADS * HEAD_DIM                                # 32
V_OFF = (N_HEADS + N_KV_HEADS) * HEAD_DIM                 # 48


# ----------------------------- fused transformer-block kernel ----------------


def _block_kernel(x_ref, cos_ref, sin_ref, bias_ref, wqkv_ref, wo3_ref, w13_ref,
                  w2_ref, o_ref, *, batch, seqlen, n_heads, n_kv_heads, head_dim,
                  ffn_hidden, eps):
    n_rep = n_heads // n_kv_heads

    x = x_ref[...]                                            # (B*S, D) f32

    # ---- attention RMSNorm (norm weight folded into wqkv) -------------------
    xn = x * jax.lax.rsqrt(jnp.mean(x * x, axis=-1, keepdims=True) + eps)

    # ---- fused QKV projection, 128 lanes: [Q|K|V | pair-swapped(Q|K) | 0] ---
    qkv = jnp.dot(xn.astype(jnp.bfloat16), wqkv_ref[...],
                  preferred_element_type=jnp.float32)         # (B*S, 128) f32

    # ---- RoPE: pure elementwise -- the pair partners (lane 2i <-> 2i+1) were
    #      produced by the swapped weight columns, so no roll / permutation.
    base = qkv[:, :QKV_WIDTH]                                 # (B*S, 64)  Q|K|V
    swapped = qkv[:, QKV_WIDTH:2 * QKV_WIDTH]                 # (B*S, 64)  swap(Q|K)|0
    qkv_rot = base * cos_ref[...] + swapped * sin_ref[...]    # (B*S, 64)

    # ---- head-major stacks with in-register GQA (kv head g -> q heads g*n_rep..)
    q_parts, k_parts, v_parts = [], [], []
    for b in range(batch):
        rows = slice(b * seqlen, (b + 1) * seqlen)
        k_slabs = [qkv_rot[rows, K_OFF + g * head_dim:K_OFF + (g + 1) * head_dim]
                   for g in range(n_kv_heads)]
        v_slabs = [qkv_rot[rows, V_OFF + g * head_dim:V_OFF + (g + 1) * head_dim]
                   for g in range(n_kv_heads)]
        for h in range(n_heads):
            q_parts.append(qkv_rot[rows, h * head_dim:(h + 1) * head_dim])
            k_parts.append(k_slabs[h // n_rep])
            v_parts.append(v_slabs[h // n_rep])
    q3 = jnp.stack(q_parts, axis=0)                           # (B*H, S, Hd)
    k3 = jnp.stack(k_parts, axis=0)
    v3 = jnp.stack(v_parts, axis=0)

    # ---- causal attention over all (batch, head) pairs in ONE batched einsum.
    #      1/sqrt(head_dim) is folded into wq; causal -1e30 bias is precomputed.
    s_att = jnp.einsum("hqd,hkd->hqk",
                       q3.astype(jnp.bfloat16), k3.astype(jnp.bfloat16),
                       preferred_element_type=jnp.float32)    # (B*H, S, S)
    s_att = s_att + bias_ref[...]                             # (S,S) broadcasts over B*H
    m = jnp.max(s_att, axis=-1, keepdims=True)
    e = jnp.exp(s_att - m)                                    # f32 softmax (v5e-safe)
    p = e * pl.reciprocal(jnp.sum(e, axis=-1, keepdims=True), approx=True)
    out3 = jnp.einsum("hqk,hkd->hqd",
                      p.astype(jnp.bfloat16), v3.astype(jnp.bfloat16),
                      preferred_element_type=jnp.float32)     # (B*H, S, Hd)

    # ---- O-projection: one head-batched dot per batch + small head-sum ------
    wo3 = wo3_ref[...]                                        # (H, Hd, D) bf16
    attn_rows = []
    for b in range(batch):
        ob = out3[b * n_heads:(b + 1) * n_heads]              # (H, S, Hd)
        per_head = jnp.einsum("hqd,hde->hqe", ob.astype(jnp.bfloat16), wo3,
                              preferred_element_type=jnp.float32)   # (H, S, D)
        attn_rows.append(jnp.sum(per_head, axis=0))           # (S, D)
    attn = jnp.concatenate(attn_rows, axis=0)                 # (B*S, D)
    h_res = x + attn

    # ---- ffn RMSNorm (weight folded into w13) + fused SwiGLU ----------------
    hn = h_res * jax.lax.rsqrt(jnp.mean(h_res * h_res, axis=-1, keepdims=True) + eps)
    h13 = jnp.dot(hn.astype(jnp.bfloat16), w13_ref[...],
                  preferred_element_type=jnp.float32)         # (B*S, 256)
    h1 = h13[:, :ffn_hidden]
    h3 = h13[:, W3_OFF:W3_OFF + ffn_hidden]
    g13 = (h1 * jax.nn.sigmoid(h1)) * h3                      # silu(w1 x) * (w3 x), f32
    ffn = jnp.dot(g13.astype(jnp.bfloat16), w2_ref[...],
                  preferred_element_type=jnp.float32)         # (B*S, D)

    o_ref[...] = h_res + ffn


# ----------------------------- RoPE tables & one-time weight packing ----------


def precompute_rope(head_dim, end, theta=ROPE_THETA):
    freqs = 1.0 / theta ** (jnp.arange(0, head_dim, 2)[: head_dim // 2].astype(jnp.float32) / head_dim)
    t = jnp.arange(end, dtype=jnp.float32)
    ang = jnp.outer(t, freqs)                                 # (end, head_dim//2)
    return jnp.cos(ang), jnp.sin(ang)


def _rope_tables(cos, sin, batch):
    """(B*S, QKV_WIDTH) cos / signed-sin tables: RoPE on Q,K lanes, identity on V lanes."""
    s = cos.shape[0]
    cos_h = jnp.repeat(cos, 2, axis=-1)                       # (S, head_dim)
    sin_h = jnp.repeat(sin, 2, axis=-1)
    sign = jnp.tile(jnp.array([-1.0, 1.0], jnp.float32), HEAD_DIM // 2)
    sin_h = sin_h * sign                                      # -sin on even, +sin on odd lanes
    v_w = N_KV_HEADS * HEAD_DIM
    cos_row = jnp.concatenate([jnp.tile(cos_h, (1, N_HEADS + N_KV_HEADS)),
                               jnp.ones((s, v_w), jnp.float32)], axis=-1)
    sin_row = jnp.concatenate([jnp.tile(sin_h, (1, N_HEADS + N_KV_HEADS)),
                               jnp.zeros((s, v_w), jnp.float32)], axis=-1)
    return jnp.tile(cos_row, (batch, 1)), jnp.tile(sin_row, (batch, 1))


def pack_block_params(params, cos, sin, batch, seqlen):
    """One-time packing (outside jit): fused/padded bf16 weights, folded norms/scale,
    pair-swapped Q|K weight copies, RoPE tables, causal bias."""
    # Fold attention scale into wq (RoPE is linear, so pre-scaling is exact).
    wq = params["wq"] * (1.0 / math.sqrt(HEAD_DIM))
    wqkv = jnp.concatenate([wq, params["wk"], params["wv"]], axis=1)      # (D, 64)
    wqkv = params["attn_norm"][:, None] * wqkv                            # fold RMSNorm weight
    # Pair-swapped copy of the rotated (Q|K) columns -> the MXU computes the RoPE partner.
    j = jnp.arange(QK_WIDTH)
    swap_idx = j + 1 - 2 * (j % 2)                                        # 2i <-> 2i+1
    w_sw = wqkv[:, :QK_WIDTH][:, swap_idx]                                # (D, 48)
    wqkv_big = jnp.concatenate(
        [wqkv, w_sw, jnp.zeros((DIM, QKV_PAD - QKV_WIDTH - QK_WIDTH), jnp.float32)],
        axis=1).astype(jnp.bfloat16)                                      # (D, 128)

    w13 = jnp.zeros((DIM, W13_PAD), jnp.float32)
    w13 = w13.at[:, :FFN_HIDDEN].set(params["ffn_norm"][:, None] * params["w1"])
    w13 = w13.at[:, W3_OFF:W3_OFF + FFN_HIDDEN].set(params["ffn_norm"][:, None] * params["w3"])
    w13 = w13.astype(jnp.bfloat16)                                        # (D, 256)

    wo3 = params["wo"].reshape(N_HEADS, HEAD_DIM, DIM).astype(jnp.bfloat16)
    w2 = params["w2"].astype(jnp.bfloat16)                                # (96, 32)

    cos_t, sin_t = _rope_tables(cos, sin, batch)                          # (B*S, 64) each
    causal = jnp.tril(jnp.ones((seqlen, seqlen), bool))
    bias = jnp.where(causal, 0.0, -1e30).astype(jnp.float32)              # (S, S)

    return dict(wqkv=wqkv_big, w13=w13, wo3=wo3, w2=w2, cos=cos_t, sin=sin_t, bias=bias)


# ----------------------------- wrapper ----------------------------------------


def transformer_block_pallas(x, packed):
    """x: (B, S, D) f32; packed: dict from pack_block_params -> (B, S, D) f32."""
    b, s, d = x.shape
    bs = b * s
    x2 = x.reshape(bs, d)                                      # free bitcast in XLA

    kernel = functools.partial(
        _block_kernel, batch=b, seqlen=s, n_heads=N_HEADS, n_kv_heads=N_KV_HEADS,
        head_dim=HEAD_DIM, ffn_hidden=FFN_HIDDEN, eps=NORM_EPS)

    vmem = pl.BlockSpec(memory_space=pltpu.MemorySpace.VMEM)   # whole array in VMEM
    out = pl.pallas_call(
        kernel,
        out_shape=jax.ShapeDtypeStruct((bs, d), jnp.float32),
        in_specs=[vmem] * 8,
        out_specs=vmem,
    )(x2, packed["cos"], packed["sin"], packed["bias"], packed["wqkv"],
      packed["wo3"], packed["w13"], packed["w2"])
    return out.reshape(b, s, d)


# ----------------------------- pure-JAX reference (f32) ------------------------


def transformer_block_ref(x, p, cos, sin):
    b, s, d = x.shape
    n_rep = N_HEADS // N_KV_HEADS

    def rms(v, w):
        return v * jax.lax.rsqrt(jnp.mean(v * v, axis=-1, keepdims=True) + NORM_EPS) * w

    xn = rms(x, p["attn_norm"])
    xq = (xn.reshape(-1, d) @ p["wq"]).reshape(b, s, N_HEADS, HEAD_DIM)
    xk = (xn.reshape(-1, d) @ p["wk"]).reshape(b, s, N_KV_HEADS, HEAD_DIM)
    xv = (xn.reshape(-1, d) @ p["wv"]).reshape(b, s, N_KV_HEADS, HEAD_DIM)

    def rope(t):
        tp = t.reshape(*t.shape[:-1], HEAD_DIM // 2, 2)
        tr, ti = tp[..., 0], tp[..., 1]
        c = cos[None, :, None, :]
        si = sin[None, :, None, :]
        return jnp.stack([tr * c - ti * si, tr * si + ti * c], axis=-1).reshape(t.shape)

    xq, xk = rope(xq), rope(xk)
    xk = jnp.repeat(xk, n_rep, axis=2)          # repeat_interleave == PyTorch repeat_kv
    xv = jnp.repeat(xv, n_rep, axis=2)
    q = xq.transpose(0, 2, 1, 3)
    k = xk.transpose(0, 2, 1, 3)
    v = xv.transpose(0, 2, 1, 3)
    att = jnp.einsum("bhqd,bhkd->bhqk", q, k) / math.sqrt(HEAD_DIM)
    causal = jnp.tril(jnp.ones((s, s), bool))
    att = jnp.where(causal[None, None], att, -jnp.inf)
    pr = jax.nn.softmax(att, axis=-1)
    o = jnp.einsum("bhqk,bhkd->bhqd", pr, v).transpose(0, 2, 1, 3).reshape(b * s, d)
    h = x + (o @ p["wo"]).reshape(b, s, d)

    hn = rms(h, p["ffn_norm"])
    h1 = hn.reshape(-1, d) @ p["w1"]
    h3 = hn.reshape(-1, d) @ p["w3"]
    ffn = ((h1 * jax.nn.sigmoid(h1)) * h3) @ p["w2"]
    return h + ffn.reshape(b, s, d)


# ----------------------------- deterministic init ------------------------------


def _trunc_normal(key, shape, std):
    return jax.random.truncated_normal(key, -2.0, 2.0, shape, jnp.float32) * std


def init_params(key):
    ks = jax.random.split(key, 9)
    return dict(
        wq=_trunc_normal(ks[0], (DIM, N_HEADS * HEAD_DIM), 1.0 / math.sqrt(DIM)),
        wk=_trunc_normal(ks[1], (DIM, N_KV_HEADS * HEAD_DIM), 1.0 / math.sqrt(DIM)),
        wv=_trunc_normal(ks[2], (DIM, N_KV_HEADS * HEAD_DIM), 1.0 / math.sqrt(DIM)),
        wo=_trunc_normal(ks[3], (N_HEADS * HEAD_DIM, DIM), 1.0 / math.sqrt(DIM)),
        w1=_trunc_normal(ks[4], (DIM, FFN_HIDDEN), 1.0 / math.sqrt(DIM)),
        w3=_trunc_normal(ks[5], (DIM, FFN_HIDDEN), 1.0 / math.sqrt(DIM)),
        w2=_trunc_normal(ks[6], (FFN_HIDDEN, DIM), 1.0 / math.sqrt(FFN_HIDDEN)),
        attn_norm=1.0 + 0.1 * jax.random.normal(ks[7], (DIM,), jnp.float32),
        ffn_norm=1.0 + 0.1 * jax.random.normal(ks[8], (DIM,), jnp.float32),
    )


# ----------------------------- main --------------------------------------------

if __name__ == "__main__":
    key = jax.random.PRNGKey(0)
    pkey, xkey = jax.random.split(key)

    params = init_params(pkey)
    x = jax.random.normal(xkey, (BATCH, SEQLEN, DIM), jnp.float32)
    cos, sin = precompute_rope(HEAD_DIM, SEQLEN)              # start_pos = 0

    # Pack / fold weights ONCE, outside the jitted forward.
    packed = pack_block_params(params, cos, sin, BATCH, SEQLEN)

    fwd = jax.jit(transformer_block_pallas)
    out = fwd(x, packed)
    jax.block_until_ready(out)

    assert out.shape == (BATCH, SEQLEN, DIM)
    assert bool(jnp.isfinite(out).all())

    ref = transformer_block_ref(x, params, cos, sin)
    max_err = float(jnp.max(jnp.abs(out - ref)))
    # bf16 MXU operands + approx reciprocal -> small drift vs the f32 reference.
    assert max_err < 5e-2, f"max abs error vs f32 reference: {max_err}"

    print("KERNEL_OK")
</pallas_src>

<mosaic_0001>
module attributes {stable_mosaic.version = 11 : i64} {
  func.func @_block_kernel(%arg0: memref<16x32xf32, #tpu.memory_space<vmem>>, %arg1: memref<16x64xf32, #tpu.memory_space<vmem>>, %arg2: memref<16x64xf32, #tpu.memory_space<vmem>>, %arg3: memref<8x8xf32, #tpu.memory_space<vmem>>, %arg4: memref<32x128xbf16, #tpu.memory_space<vmem>>, %arg5: memref<4x8x32xbf16, #tpu.memory_space<vmem>>, %arg6: memref<32x256xbf16, #tpu.memory_space<vmem>>, %arg7: memref<96x32xbf16, #tpu.memory_space<vmem>>, %arg8: memref<16x32xf32, #tpu.memory_space<vmem>>) attributes {dimension_semantics = [], scalar_prefetch = 0 : i64, scratch_operands = 0 : i64, tpu.core_type = #tpu.core_type<tc>} {
    %c0 = arith.constant 0 : index
    %c0_0 = arith.constant 0 : index
    %0 = vector.load %arg0[%c0, %c0_0] : memref<16x32xf32, #tpu.memory_space<vmem>>, vector<16x32xf32>
    %1 = arith.mulf %0, %0 : vector<16x32xf32>
    %cst = arith.constant dense<0.000000e+00> : vector<16xf32>
    %2 = vector.multi_reduction <add>, %1, %cst [1] : vector<16x32xf32> to vector<16xf32>
    %3 = vector.shape_cast %2 : vector<16xf32> to vector<16x1xf32>
    %cst_1 = arith.constant 3.200000e+01 : f32
    %4 = vector.broadcast %cst_1 : f32 to vector<16x1xf32>
    %5 = arith.divf %3, %4 : vector<16x1xf32>
    %cst_2 = arith.constant 9.99999974E-6 : f32
    %6 = vector.broadcast %cst_2 : f32 to vector<16x1xf32>
    %7 = arith.addf %5, %6 : vector<16x1xf32>
    %8 = math.rsqrt %7 : vector<16x1xf32>
    %9 = vector.broadcast %8 : vector<16x1xf32> to vector<16x32xf32>
    %10 = arith.mulf %0, %9 : vector<16x32xf32>
    %11 = arith.truncf %10 : vector<16x32xf32> to vector<16x32xbf16>
    %c0_3 = arith.constant 0 : index
    %c0_4 = arith.constant 0 : index
    %12 = vector.load %arg4[%c0_3, %c0_4] : memref<32x128xbf16, #tpu.memory_space<vmem>>, vector<32x128xbf16>
    %cst_5 = arith.constant dense<0.000000e+00> : vector<16x128xf32>
    %13 = tpu.matmul %11, %12, %cst_5 {dimension_numbers = #tpu.dot_dimension_numbers<[1], [0], [0], [1], [0, 0, 1, 1], [], []>} : vector<16x32xbf16>, vector<32x128xbf16>, vector<16x128xf32> -> vector<16x128xf32>
    %14 = vector.extract_strided_slice %13 {offsets = [0, 0], sizes = [16, 64], strides = [1, 1]} : vector<16x128xf32> to vector<16x64xf32>
    %15 = vector.extract_strided_slice %13 {offsets = [0, 64], sizes = [16, 64], strides = [1, 1]} : vector<16x128xf32> to vector<16x64xf32>
    %c0_6 = arith.constant 0 : index
    %c0_7 = arith.constant 0 : index
    %16 = vector.load %arg1[%c0_6, %c0_7] : memref<16x64xf32, #tpu.memory_space<vmem>>, vector<16x64xf32>
    %17 = arith.mulf %14, %16 : vector<16x64xf32>
    %c0_8 = arith.constant 0 : index
    %c0_9 = arith.constant 0 : index
    %18 = vector.load %arg2[%c0_8, %c0_9] : memref<16x64xf32, #tpu.memory_space<vmem>>, vector<16x64xf32>
    %19 = arith.mulf %15, %18 : vector<16x64xf32>
    %20 = arith.addf %17, %19 : vector<16x64xf32>
    %21 = vector.extract_strided_slice %20 {offsets = [0, 32], sizes = [8, 8], strides = [1, 1]} : vector<16x64xf32> to vector<8x8xf32>
    %22 = vector.extract_strided_slice %20 {offsets = [0, 40], sizes = [8, 8], strides = [1, 1]} : vector<16x64xf32> to vector<8x8xf32>
    %23 = vector.extract_strided_slice %20 {offsets = [0, 48], sizes = [8, 8], strides = [1, 1]} : vector<16x64xf32> to vector<8x8xf32>
    %24 = vector.extract_strided_slice %20 {offsets = [0, 56], sizes = [8, 8], strides = [1, 1]} : vector<16x64xf32> to vector<8x8xf32>
    %25 = vector.extract_strided_slice %20 {offsets = [0, 0], sizes = [8, 8], strides = [1, 1]} : vector<16x64xf32> to vector<8x8xf32>
    %26 = vector.extract_strided_slice %20 {offsets = [0, 8], sizes = [8, 8], strides = [1, 1]} : vector<16x64xf32> to vector<8x8xf32>
    %27 = vector.extract_strided_slice %20 {offsets = [0, 16], sizes = [8, 8], strides = [1, 1]} : vector<16x64xf32> to vector<8x8xf32>
    %28 = vector.extract_strided_slice %20 {offsets = [0, 24], sizes = [8, 8], strides = [1, 1]} : vector<16x64xf32> to vector<8x8xf32>
    %29 = vector.extract_strided_slice %20 {offsets = [8, 32], sizes = [8, 8], strides = [1, 1]} : vector<16x64xf32> to vector<8x8xf32>
    %30 = vector.extract_strided_slice %20 {offsets = [8, 40], sizes = [8, 8], strides = [1, 1]} : vector<16x64xf32> to vector<8x8xf32>
    %31 = vector.extract_strided_slice %20 {offsets = [8, 48], sizes = [8, 8], strides = [1, 1]} : vector<16x64xf32> to vector<8x8xf32>
    %32 = vector.extract_strided_slice %20 {offsets = [8, 56], sizes = [8, 8], strides = [1, 1]} : vector<16x64xf32> to vector<8x8xf32>
    %33 = vector.extract_strided_slice %20 {offsets = [8, 0], sizes = [8, 8], strides = [1, 1]} : vector<16x64xf32> to vector<8x8xf32>
    %34 = vector.extract_strided_slice %20 {offsets = [8, 8], sizes = [8, 8], strides = [1, 1]} : vector<16x64xf32> to vector<8x8xf32>
    %35 = vector.extract_strided_slice %20 {offsets = [8, 16], sizes = [8, 8], strides = [1, 1]} : vector<16x64xf32> to vector<8x8xf32>
    %36 = vector.extract_strided_slice %20 {offsets = [8, 24], sizes = [8, 8], strides = [1, 1]} : vector<16x64xf32> to vector<8x8xf32>
    %37 = vector.shape_cast %25 : vector<8x8xf32> to vector<1x8x8xf32>
    %38 = vector.shape_cast %26 : vector<8x8xf32> to vector<1x8x8xf32>
    %39 = vector.shape_cast %27 : vector<8x8xf32> to vector<1x8x8xf32>
    %40 = vector.shape_cast %28 : vector<8x8xf32> to vector<1x8x8xf32>
    %41 = vector.shape_cast %33 : vector<8x8xf32> to vector<1x8x8xf32>
    %42 = vector.shape_cast %34 : vector<8x8xf32> to vector<1x8x8xf32>
    %43 = vector.shape_cast %35 : vector<8x8xf32> to vector<1x8x8xf32>
    %44 = vector.shape_cast %36 : vector<8x8xf32> to vector<1x8x8xf32>
    %45 = tpu.concatenate %37, %38, %39, %40, %41, %42, %43, %44 in 0 : vector<1x8x8xf32>, vector<1x8x8xf32>, vector<1x8x8xf32>, vector<1x8x8xf32>, vector<1x8x8xf32>, vector<1x8x8xf32>, vector<1x8x8xf32>, vector<1x8x8xf32> -> vector<8x8x8xf32>
    %46 = vector.shape_cast %21 : vector<8x8xf32> to vector<1x8x8xf32>
    %47 = vector.shape_cast %21 : vector<8x8xf32> to vector<1x8x8xf32>
    %48 = vector.shape_cast %22 : vector<8x8xf32> to vector<1x8x8xf32>
    %49 = vector.shape_cast %22 : vector<8x8xf32> to vector<1x8x8xf32>
    %50 = vector.shape_cast %29 : vector<8x8xf32> to vector<1x8x8xf32>
    %51 = vector.shape_cast %29 : vector<8x8xf32> to vector<1x8x8xf32>
    %52 = vector.shape_cast %30 : vector<8x8xf32> to vector<1x8x8xf32>
    %53 = vector.shape_cast %30 : vector<8x8xf32> to vector<1x8x8xf32>
    %54 = tpu.concatenate %46, %47, %48, %49, %50, %51, %52, %53 in 0 : vector<1x8x8xf32>, vector<1x8x8xf32>, vector<1x8x8xf32>, vector<1x8x8xf32>, vector<1x8x8xf32>, vector<1x8x8xf32>, vector<1x8x8xf32>, vector<1x8x8xf32> -> vector<8x8x8xf32>
    %55 = vector.shape_cast %23 : vector<8x8xf32> to vector<1x8x8xf32>
    %56 = vector.shape_cast %23 : vector<8x8xf32> to vector<1x8x8xf32>
    %57 = vector.shape_cast %24 : vector<8x8xf32> to vector<1x8x8xf32>
    %58 = vector.shape_cast %24 : vector<8x8xf32> to vector<1x8x8xf32>
    %59 = vector.shape_cast %31 : vector<8x8xf32> to vector<1x8x8xf32>
    %60 = vector.shape_cast %31 : vector<8x8xf32> to vector<1x8x8xf32>
    %61 = vector.shape_cast %32 : vector<8x8xf32> to vector<1x8x8xf32>
    %62 = vector.shape_cast %32 : vector<8x8xf32> to vector<1x8x8xf32>
    %63 = tpu.concatenate %55, %56, %57, %58, %59, %60, %61, %62 in 0 : vector<1x8x8xf32>, vector<1x8x8xf32>, vector<1x8x8xf32>, vector<1x8x8xf32>, vector<1x8x8xf32>, vector<1x8x8xf32>, vector<1x8x8xf32>, vector<1x8x8xf32> -> vector<8x8x8xf32>
    %64 = arith.truncf %45 : vector<8x8x8xf32> to vector<8x8x8xbf16>
    %65 = arith.truncf %54 : vector<8x8x8xf32> to vector<8x8x8xbf16>
    "tpu.trace_start"() <{level = 10 : i32, message = "hqd,hkd->hqk"}> : () -> ()
    %cst_10 = arith.constant dense<0.000000e+00> : vector<8x8x8xf32>
    %66 = tpu.matmul %64, %65, %cst_10 {dimension_numbers = #tpu.dot_dimension_numbers<[2], [2], [1], [1], [0, 0, 0, 1, 1, 1], [0], [0]>} : vector<8x8x8xbf16>, vector<8x8x8xbf16>, vector<8x8x8xf32> -> vector<8x8x8xf32>
    "tpu.trace_stop"() : () -> ()
    %c0_11 = arith.constant 0 : index
    %c0_12 = arith.constant 0 : index
    %67 = vector.load %arg3[%c0_11, %c0_12] : memref<8x8xf32, #tpu.memory_space<vmem>>, vector<8x8xf32>
    %68 = vector.shape_cast %67 : vector<8x8xf32> to vector<1x8x8xf32>
    %69 = vector.broadcast %68 : vector<1x8x8xf32> to vector<8x8x8xf32>
    %70 = arith.addf %66, %69 : vector<8x8x8xf32>
    %cst_13 = arith.constant dense<0xFF800000> : vector<8x8xf32>
    %71 = vector.multi_reduction <maximumf>, %70, %cst_13 [2] : vector<8x8x8xf32> to vector<8x8xf32>
    %72 = vector.shape_cast %71 : vector<8x8xf32> to vector<8x8x1xf32>
    %73 = vector.broadcast %72 : vector<8x8x1xf32> to vector<8x8x8xf32>
    %74 = arith.subf %70, %73 : vector<8x8x8xf32>
    %75 = math.exp %74 : vector<8x8x8xf32>
    %cst_14 = arith.constant dense<0.000000e+00> : vector<8x8xf32>
    %76 = vector.multi_reduction <add>, %75, %cst_14 [2] : vector<8x8x8xf32> to vector<8x8xf32>
    %77 = vector.shape_cast %76 : vector<8x8xf32> to vector<8x8x1xf32>
    %78 = tpu.reciprocal %77 {approx = true} : vector<8x8x1xf32> -> vector<8x8x1xf32>
    %79 = vector.broadcast %78 : vector<8x8x1xf32> to vector<8x8x8xf32>
    %80 = arith.mulf %75, %79 : vector<8x8x8xf32>
    %81 = arith.truncf %80 : vector<8x8x8xf32> to vector<8x8x8xbf16>
    %82 = arith.truncf %63 : vector<8x8x8xf32> to vector<8x8x8xbf16>
    "tpu.trace_start"() <{level = 10 : i32, message = "hqk,hkd->hqd"}> : () -> ()
    %cst_15 = arith.constant dense<0.000000e+00> : vector<8x8x8xf32>
    %83 = tpu.matmul %81, %82, %cst_15 {dimension_numbers = #tpu.dot_dimension_numbers<[2], [1], [1], [2], [0, 0, 0, 1, 1, 2], [0], [0]>} : vector<8x8x8xbf16>, vector<8x8x8xbf16>, vector<8x8x8xf32> -> vector<8x8x8xf32>
    "tpu.trace_stop"() : () -> ()
    %c0_16 = arith.constant 0 : index
    %c0_17 = arith.constant 0 : index
    %c0_18 = arith.constant 0 : index
    %84 = vector.load %arg5[%c0_16, %c0_17, %c0_18] : memref<4x8x32xbf16, #tpu.memory_space<vmem>>, vector<4x8x32xbf16>
    %85 = vector.extract_strided_slice %83 {offsets = [0, 0, 0], sizes = [4, 8, 8], strides = [1, 1, 1]} : vector<8x8x8xf32> to vector<4x8x8xf32>
    %86 = arith.truncf %85 : vector<4x8x8xf32> to vector<4x8x8xbf16>
    "tpu.trace_start"() <{level = 10 : i32, message = "hqd,hde->hqe"}> : () -> ()
    %cst_19 = arith.constant dense<0.000000e+00> : vector<4x8x32xf32>
    %87 = tpu.matmul %86, %84, %cst_19 {dimension_numbers = #tpu.dot_dimension_numbers<[2], [1], [1], [2], [0, 0, 0, 1, 1, 2], [0], [0]>} : vector<4x8x8xbf16>, vector<4x8x32xbf16>, vector<4x8x32xf32> -> vector<4x8x32xf32>
    "tpu.trace_stop"() : () -> ()
    %cst_20 = arith.constant dense<0.000000e+00> : vector<8x32xf32>
    %88 = vector.multi_reduction <add>, %87, %cst_20 [0] : vector<4x8x32xf32> to vector<8x32xf32>
    %89 = vector.extract_strided_slice %83 {offsets = [4, 0, 0], sizes = [4, 8, 8], strides = [1, 1, 1]} : vector<8x8x8xf32> to vector<4x8x8xf32>
    %90 = arith.truncf %89 : vector<4x8x8xf32> to vector<4x8x8xbf16>
    "tpu.trace_start"() <{level = 10 : i32, message = "hqd,hde->hqe"}> : () -> ()
    %cst_21 = arith.constant dense<0.000000e+00> : vector<4x8x32xf32>
    %91 = tpu.matmul %90, %84, %cst_21 {dimension_numbers = #tpu.dot_dimension_numbers<[2], [1], [1], [2], [0, 0, 0, 1, 1, 2], [0], [0]>} : vector<4x8x8xbf16>, vector<4x8x32xbf16>, vector<4x8x32xf32> -> vector<4x8x32xf32>
    "tpu.trace_stop"() : () -> ()
    %cst_22 = arith.constant dense<0.000000e+00> : vector<8x32xf32>
    %92 = vector.multi_reduction <add>, %91, %cst_22 [0] : vector<4x8x32xf32> to vector<8x32xf32>
    %93 = tpu.concatenate %88, %92 in 0 : vector<8x32xf32>, vector<8x32xf32> -> vector<16x32xf32>
    %94 = arith.addf %0, %93 : vector<16x32xf32>
    %95 = arith.mulf %94, %94 : vector<16x32xf32>
    %cst_23 = arith.constant dense<0.000000e+00> : vector<16xf32>
    %96 = vector.multi_reduction <add>, %95, %cst_23 [1] : vector<16x32xf32> to vector<16xf32>
    %97 = vector.shape_cast %96 : vector<16xf32> to vector<16x1xf32>
    %cst_24 = arith.constant 3.200000e+01 : f32
    %98 = vector.broadcast %cst_24 : f32 to vector<16x1xf32>
    %99 = arith.divf %97, %98 : vector<16x1xf32>
    %cst_25 = arith.constant 9.99999974E-6 : f32
    %100 = vector.broadcast %cst_25 : f32 to vector<16x1xf32>
    %101 = arith.addf %99, %100 : vector<16x1xf32>
    %102 = math.rsqrt %101 : vector<16x1xf32>
    %103 = vector.broadcast %102 : vector<16x1xf32> to vector<16x32xf32>
    %104 = arith.mulf %94, %103 : vector<16x32xf32>
    %105 = arith.truncf %104 : vector<16x32xf32> to vector<16x32xbf16>
    %c0_26 = arith.constant 0 : index
    %c0_27 = arith.constant 0 : index
    %106 = vector.load %arg6[%c0_26, %c0_27] : memref<32x256xbf16, #tpu.memory_space<vmem>>, vector<32x256xbf16>
    %cst_28 = arith.constant dense<0.000000e+00> : vector<16x256xf32>
    %107 = tpu.matmul %105, %106, %cst_28 {dimension_numbers = #tpu.dot_dimension_numbers<[1], [0], [0], [1], [0, 0, 1, 1], [], []>} : vector<16x32xbf16>, vector<32x256xbf16>, vector<16x256xf32> -> vector<16x256xf32>
    %108 = vector.extract_strided_slice %107 {offsets = [0, 0], sizes = [16, 96], strides = [1, 1]} : vector<16x256xf32> to vector<16x96xf32>
    %109 = vector.extract_strided_slice %107 {offsets = [0, 128], sizes = [16, 96], strides = [1, 1]} : vector<16x256xf32> to vector<16x96xf32>
    %110 = arith.negf %108 : vector<16x96xf32>
    %111 = math.exp %110 : vector<16x96xf32>
    %cst_29 = arith.constant 1.000000e+00 : f32
    %112 = vector.broadcast %cst_29 : f32 to vector<16x96xf32>
    %113 = arith.addf %112, %111 : vector<16x96xf32>
    %114 = arith.divf %112, %113 : vector<16x96xf32>
    %115 = arith.mulf %108, %114 : vector<16x96xf32>
    %116 = arith.mulf %115, %109 : vector<16x96xf32>
    %117 = arith.truncf %116 : vector<16x96xf32> to vector<16x96xbf16>
    %c0_30 = arith.constant 0 : index
    %c0_31 = arith.constant 0 : index
    %118 = vector.load %arg7[%c0_30, %c0_31] : memref<96x32xbf16, #tpu.memory_space<vmem>>, vector<96x32xbf16>
    %cst_32 = arith.constant dense<0.000000e+00> : vector<16x32xf32>
    %119 = tpu.matmul %117, %118, %cst_32 {dimension_numbers = #tpu.dot_dimension_numbers<[1], [0], [0], [1], [0, 0, 1, 1], [], []>} : vector<16x96xbf16>, vector<96x32xbf16>, vector<16x32xf32> -> vector<16x32xf32>
    %120 = arith.addf %94, %119 : vector<16x32xf32>
    %c0_33 = arith.constant 0 : index
    %c0_34 = arith.constant 0 : index
    %121 = vector.load %arg8[%c0_33, %c0_34] : memref<16x32xf32, #tpu.memory_space<vmem>>, vector<16x32xf32>
    tpu.vector_store %arg8[%c0_33, %c0_34], %120 {strides = array<i32>} : memref<16x32xf32, #tpu.memory_space<vmem>>, vector<16x32xf32>,
    return
  }
}

</mosaic_0001>

<llo_original>
// kernel: transformer_block_pallas.1
$region0: #{transformer_block_pallas.1}
  #allocation0 [shape = 'u32[]', space=smem, size = 0x4, offset = 0x4, fixed_abs, tag = 'smem constant byte address 0x4 - core index']
  #allocation1 [shape = 'u32[72,128]{1,0:T(1,128)}', space=vmem, size = 0x9000, scoped, tag = 'internal scratch']
  %s0 = inlined_call_operand.vmem [shape: f32[16,32], index: 0, kind: input, shape index: {}]
  %s1 = inlined_call_operand.vmem [shape: f32[16,64], index: 1, kind: input, shape index: {}]
  %s2 = inlined_call_operand.hbm [shape: f32[16,64], index: 2, kind: input, shape index: {}]
  %s3 = inlined_call_operand.hbm [shape: f32[8,8], index: 3, kind: input, shape index: {}]
  %s4 = inlined_call_operand.hbm [shape: bf16[32,128], index: 4, kind: input, shape index: {}]
  %s5 = inlined_call_operand.hbm [shape: bf16[4,8,32], index: 5, kind: input, shape index: {}]
  %s6 = inlined_call_operand.vmem [shape: bf16[32,256], index: 6, kind: input, shape index: {}]
  %s7 = inlined_call_operand.vmem [shape: bf16[96,32], index: 7, kind: input, shape index: {}]
  %s8 = inlined_call_operand.hbm [shape: f32[16,32], index: 8, kind: output, shape index: {}]
  %s9 = sld [smem:[#allocation0]]
  $region58: #{transformer_block_pallas.1} parent=0
    _
  %s11 = ssub.s32 1, %s9
  %s12 = scalar_select 0, %s11, %s9
  $region1: #{transformer_block_pallas.1} parent=0
    #allocation2 [shape = 'u8[8192]{0}', space=vmem, size = 0x2000, scoped, tag = 'input window, operand 2, single buffered']
    #allocation3 [shape = 's32[1]{0}', space=sflag, size = 0x4, scoped, tag = 'scoped memory for transformer_block_pallas.1']
    #allocation4 [shape = 's32[1]{0}', space=sflag, size = 0x4, scoped, tag = 'scoped memory for transformer_block_pallas.1']
    #allocation5 [shape = 'u8[4096]{0}', space=vmem, size = 0x1000, scoped, tag = 'input window, operand 3, single buffered']
    #allocation6 [shape = 's32[1]{0}', space=sflag, size = 0x4, scoped, tag = 'scoped memory for transformer_block_pallas.1']
    #allocation7 [shape = 'u8[8192]{0}', space=vmem, size = 0x2000, scoped, tag = 'input window, operand 4, single buffered']
    #allocation8 [shape = 'u8[8192]{0}', space=vmem, size = 0x2000, scoped, tag = 'input window, operand 5, single buffered']
    #allocation9 [shape = 's32[1]{0}', space=sflag, size = 0x4, scoped, tag = 'scoped memory for transformer_block_pallas.1']
    #allocation10 [shape = 'u8[8192]{0}', space=vmem, size = 0x2000, scoped, tag = 'output window, operand 0, single buffered']
    %13 = vsyncpa [#allocation3], 0
    %14 = vsyncpa [#allocation6], 0
    %15 = vsyncpa [#allocation9], 0
    %16 = vsyncpa [#allocation4], 0
    // Predicated region
    $region2: #{transformer_block_pallas.1} parent=1 // pred_check
      _
    $region3: #{transformer_block_pallas.1} parent=1 // pred_check_branch
      %18 = sbr.rel (0) target = $region5
    $region4: #{transformer_block_pallas.1} parent=1 // pred_region
      _
    $region5: #{transformer_block_pallas.1} parent=1 // pred_fallthru
      _
    // Predicated region
    $region6: #{transformer_block_pallas.1} parent=1 // pred_check
      _
    $region7: #{transformer_block_pallas.1} parent=1 // pred_check_branch
      %20 = sbr.rel (0) target = $region9
    $region8: #{transformer_block_pallas.1} parent=1 // pred_region
      _
    $region9: #{transformer_block_pallas.1} parent=1 // pred_fallthru
      _
    // Predicated region
    $region10: #{transformer_block_pallas.1} parent=1 // pred_check
      _
    $region11: #{transformer_block_pallas.1} parent=1 // pred_check_branch
      %22 = sbr.rel (0) target = $region13
    $region12: #{transformer_block_pallas.1} parent=1 // pred_region
      %24 = vsyncadd [#allocation3], 0
      %s25 = sshll.u32 %s2, 4
      %s26 = int_to_ptr.hbm [resolvable:$true] %s25
      %s27 = sshll.u32 [#allocation2], 4
      %s28 = int_to_ptr.vmem [resolvable:$true] %s27
      %33 = dma.hbm_to_vmem [thread:$0]  %s26, 256, %s28, [#allocation3], 128, 128, 8
    $region13: #{transformer_block_pallas.1} parent=1 // pred_fallthru
      _
    // Predicated region
    $region14: #{transformer_block_pallas.1} parent=1 // pred_check
      _
    $region15: #{transformer_block_pallas.1} parent=1 // pred_check_branch
      %35 = sbr.rel (0) target = $region17
    $region16: #{transformer_block_pallas.1} parent=1 // pred_region
      %37 = vsyncadd [#allocation6], 0
      %s39 = sshll.u32 %s3, 4
      %s40 = int_to_ptr.hbm [resolvable:$true] %s39
      %s41 = sshll.u32 [#allocation5], 4
      %s42 = int_to_ptr.vmem [resolvable:$true] %s41
      %44 = dma.hbm_to_vmem [thread:$0]  %s40, 128, %s42, [#allocation6]
    $region17: #{transformer_block_pallas.1} parent=1 // pred_fallthru
      _
    // Predicated region
    $region18: #{transformer_block_pallas.1} parent=1 // pred_check
      _
    $region19: #{transformer_block_pallas.1} parent=1 // pred_check_branch
      %46 = sbr.rel (0) target = $region21
    $region20: #{transformer_block_pallas.1} parent=1 // pred_region
      %48 = vsyncadd [#allocation6], 0
      %s49 = sshll.u32 %s4, 4
      %s50 = int_to_ptr.hbm [resolvable:$true] %s49
      %s51 = sshll.u32 [#allocation7], 4
      %s52 = int_to_ptr.vmem [resolvable:$true] %s51
      %57 = dma.hbm_to_vmem [thread:$0]  %s50, 256, %s52, [#allocation6], 64, 64, 4
    $region21: #{transformer_block_pallas.1} parent=1 // pred_fallthru
      _
    // Predicated region
    $region22: #{transformer_block_pallas.1} parent=1 // pred_check
      _
    $region23: #{transformer_block_pallas.1} parent=1 // pred_check_branch
      %59 = sbr.rel (0) target = $region25
    $region24: #{transformer_block_pallas.1} parent=1 // pred_region
      %61 = vsyncadd [#allocation9], 0
      %s62 = sshll.u32 %s5, 4
      %s63 = int_to_ptr.hbm [resolvable:$true] %s62
      %s64 = sshll.u32 [#allocation8], 4
      %s65 = int_to_ptr.vmem [resolvable:$true] %s64
      %70 = dma.hbm_to_vmem [thread:$0]  %s63, 256, %s65, [#allocation9], 64, 64, 4
    $region25: #{transformer_block_pallas.1} parent=1 // pred_fallthru
      _
    // Predicated region
    $region26: #{transformer_block_pallas.1} parent=1 // pred_check
      _
    $region27: #{transformer_block_pallas.1} parent=1 // pred_check_branch
      %72 = sbr.rel (0) target = $region29
    $region28: #{transformer_block_pallas.1} parent=1 // pred_region
      _
    $region29: #{transformer_block_pallas.1} parent=1 // pred_fallthru
      _
    // Predicated region
    $region30: #{transformer_block_pallas.1} parent=1 // pred_check
      _
    $region31: #{transformer_block_pallas.1} parent=1 // pred_check_branch
      %74 = sbr.rel (0) target = $region33
    $region32: #{transformer_block_pallas.1} parent=1 // pred_region
      _
    $region33: #{transformer_block_pallas.1} parent=1 // pred_fallthru
      _
    // Predicated region
    $region34: #{transformer_block_pallas.1} parent=1 // pred_check
      _
    $region35: #{transformer_block_pallas.1} parent=1 // pred_check_branch
      %76 = sbr.rel (0) target = $region37
    $region36: #{transformer_block_pallas.1} parent=1 // pred_region
      %78 = dma.done [#allocation3], 256
    $region37: #{transformer_block_pallas.1} parent=1 // pred_fallthru
      _
    // Predicated region
    $region38: #{transformer_block_pallas.1} parent=1 // pred_check
      _
    $region39: #{transformer_block_pallas.1} parent=1 // pred_check_branch
      %80 = sbr.rel (0) target = $region41
    $region40: #{transformer_block_pallas.1} parent=1 // pred_region
      %82 = dma.done [#allocation6], 128
    $region41: #{transformer_block_pallas.1} parent=1 // pred_fallthru
      _
    // Predicated region
    $region42: #{transformer_block_pallas.1} parent=1 // pred_check
      _
    $region43: #{transformer_block_pallas.1} parent=1 // pred_check_branch
      %84 = sbr.rel (0) target = $region45
    $region44: #{transformer_block_pallas.1} parent=1 // pred_region
      %86 = dma.done [#allocation6], 256
    $region45: #{transformer_block_pallas.1} parent=1 // pred_fallthru
      _
    // Predicated region
    $region46: #{transformer_block_pallas.1} parent=1 // pred_check
      _
    $region47: #{transformer_block_pallas.1} parent=1 // pred_check_branch
      %88 = sbr.rel (0) target = $region49
    $region48: #{transformer_block_pallas.1} parent=1 // pred_region
      %90 = dma.done [#allocation9], 256
    $region49: #{transformer_block_pallas.1} parent=1 // pred_fallthru
      _
    %v92 = vld [vmem:[%s0] sm:$0xff]
    %v93 = vld [vmem:[%s0 + $0x8] sm:$0xff]
    %v94 = vmul.f32 %v92, %v92
    %v95 = vmul.f32 %v93, %v93
    %vm96 = vcmask 261120
    %v97 = vsel %vm96, %v94, 0.0
    %98 = vadd.xlane.f32.xlu0 %v97
    %v99 = vpop.xlane.xlu0 %98
    %v100 = vsel %vm96, %v95, 0.0
    %101 = vadd.xlane.f32.xlu0 %v100
    %v102 = vpop.xlane.xlu0 %101
    %v103 = vrcp.pop 32.0
    %v104 = vmul.f32 32.0, %v103
    %v105 = vsub.f32 1.0, %v104
    %v106 = vmul.f32 %v103, %v105
    %v107 = vadd.f32 %v103, %v106
    %vm108 = vweird.f32 %v103
    %v109 = vsel %vm108, %v103, %v107
    %v110 = vmul.f32 %v99, %v109
    %v111 = vmul.f32 %v102, %v109
    %v112 = vadd.f32 %v110, 1e-05
    %v113 = vadd.f32 %v111, 1e-05
    %v114 = vrsqrt.pop %v112
    %v115 = vmul.f32 %v114, %v112
    %v116 = vmul.f32 %v115, %v114
    %v117 = vmul.f32 0.5, %v116
    %v118 = vsub.f32 1.5, %v117
    %v119 = vmul.f32 %v114, %v118
    %vm120 = vweird.f32 %v112
    %vm121 = vweird.f32 %v114
    %vm122 = vmor %vm120, %vm121
    %v123 = vsel %vm122, %v114, %v119
    %v124 = vrsqrt.pop %v113
    %v125 = vmul.f32 %v124, %v113
    %v126 = vmul.f32 %v125, %v124
    %v127 = vmul.f32 0.5, %v126
    %v128 = vsub.f32 1.5, %v127
    %v129 = vmul.f32 %v124, %v128
    %vm130 = vweird.f32 %v113
    %vm131 = vweird.f32 %v124
    %vm132 = vmor %vm130, %vm131
    %v133 = vsel %vm132, %v124, %v129
    %v134 = vmul.f32 %v92, %v123
    %v135 = vmul.f32 %v93, %v133
    %v136 = vpack.c.bf16 %v135, %v134
    %v137 = vld [vmem:[#allocation7] sm:$0xf]
    %v138 = vld [vmem:[#allocation7 + $0x4] sm:$0xf]
    %v139 = vld [vmem:[#allocation7 + $0x8] sm:$0xf]
    %v140 = vld [vmem:[#allocation7 + $0xc] sm:$0xf]
    %v145 = vunpack.c.l.b16 %v137
    %v146 = vunpack.c.l.b16 %v138
    %v147 = vunpack.c.l.b16 %v139
    %v148 = vunpack.c.l.b16 %v140
    %v149 = vpack.c.b16 %v146, %v145
    %v150 = vpack.c.b16 %v148, %v147
    %v154 = vsel %vm96, %v136, 0
    %156 = vmatpush.bf16.msra.mxu0 0
    %157 = vmatpush.bf16.msra.mxu0 0
    %158 = vmatpush.bf16.msra.mxu0 0
    %159 = vmatpush.bf16.msra.mxu0 0
    %160 = vmatpush.bf16.msra.mxu0 0
    %161 = vmatpush.bf16.msra.mxu0 0
    %162 = vmatpush.bf16.msra.mxu0 %v150
    %163 = vmatpush.bf16.msra.mxu0 %v149
    %164 = vmatmul.bf16.gmra.mxu0 %v154
    %v165 = vpop.f32.mrf.mxu0
    %v166 = vadd.f32 0.0, %v165
    %v167 = vpop.f32.mrf.mxu0
    %v168 = vadd.f32 0.0, %v167
    %169 = vdwg.mxu0
    %v170 = vld [vmem:[%s1] sm:$0xff]
    %v171 = vld [vmem:[%s1 + $0x8] sm:$0xff]
    %v172 = vmul.f32 %v166, %v170
    %v173 = vmul.f32 %v168, %v171
    %v174 = vld [vmem:[#allocation2] sm:$0xff]
    %v175 = vld [vmem:[#allocation2 + $0x8] sm:$0xff]
    %178 = vrot.lane.b32.xlu0 %v174, 64
    %v179 = vpop.permute.xlu0 %178
    %180 = vrot.lane.b32.xlu0 %v175, 64
    %v181 = vpop.permute.xlu0 %180
    %v184 = vmul.f32 %v166, %v179
    %v185 = vmul.f32 %v168, %v181
    %188 = vrot.lane.b32.xlu0 %v184, 64
    %v189 = vpop.permute.xlu0 %188
    %190 = vrot.lane.b32.xlu0 %v185, 64
    %v191 = vpop.permute.xlu0 %190
    %v194 = vadd.f32 %v172, %v189
    %v195 = vadd.f32 %v173, %v191
    %197 = vrot.lane.b32.xlu0 %v194, 120
    %v198 = vpop.permute.xlu0 %197
    %200 = vrot.lane.b32.xlu0 %v194, 112
    %v201 = vpop.permute.xlu0 %200
    %203 = vrot.lane.b32.xlu0 %v194, 104
    %v204 = vpop.permute.xlu0 %203
    %207 = vrot.lane.b32.xlu0 %v195, 120
    %v208 = vpop.permute.xlu0 %207
    %210 = vrot.lane.b32.xlu0 %v195, 112
    %v211 = vpop.permute.xlu0 %210
    %213 = vrot.lane.b32.xlu0 %v195, 104
    %v214 = vpop.permute.xlu0 %213
    %v216 = vpack.c.bf16 %v194, %v194
    %v217 = vpack.c.bf16 %v198, %v198
    %v218 = vpack.c.bf16 %v201, %v201
    %v219 = vpack.c.bf16 %v204, %v204
    %v220 = vpack.c.bf16 %v195, %v195
    %v221 = vpack.c.bf16 %v208, %v208
    %v222 = vpack.c.bf16 %v211, %v211
    %v223 = vpack.c.bf16 %v214, %v214
    %v224 = vld [vmem:[#allocation5] sm:$0xff]
    %v226 = vunpack.c.l.b16 %v216
    %v227 = vpack.c.b16 %v226, %v226
    %228 = vrot.lane.b32.xlu0 %v227, 96
    %v229 = vpop.permute.xlu0 %228
    %vm230 = vcmask 64512
    %v232 = vsel %vm230, %v216, 0
    %v235 = vsel %vm230, %v229, 0
    %237 = vmatpush.bf16.xpose.msra.mxu0 0
    %238 = vmatpush.bf16.xpose.msra.mxu0 0
    %239 = vmatpush.bf16.xpose.msra.mxu0 0
    %240 = vmatpush.bf16.xpose.msra.mxu0 0
    %241 = vmatpush.bf16.xpose.msra.mxu0 0
    %242 = vmatpush.bf16.xpose.msra.mxu0 0
    %243 = vmatpush.bf16.xpose.msra.mxu0 0
    %244 = vmatpush.bf16.xpose.msra.mxu0 %v235
    %245 = vmatmul.bf16.gmra.mxu0 %v232
    %v246 = vpop.f32.mrf.mxu0
    %v247 = vadd.f32 %v224, %v246
    %v248 = vpop.f32.mrf.mxu0
    %249 = vdwg.mxu0
    %v251 = vsel %vm230, %v217, 0
    %253 = vmatpush.bf16.xpose.msra.mxu0 0
    %254 = vmatpush.bf16.xpose.msra.mxu0 0
    %255 = vmatpush.bf16.xpose.msra.mxu0 0
    %256 = vmatpush.bf16.xpose.msra.mxu0 0
    %257 = vmatpush.bf16.xpose.msra.mxu0 0
    %258 = vmatpush.bf16.xpose.msra.mxu0 0
    %259 = vmatpush.bf16.xpose.msra.mxu0 0
    %260 = vmatpush.bf16.xpose.msra.mxu0 %v235
    %261 = vmatmul.bf16.gmra.mxu0 %v251
    %v262 = vpop.f32.mrf.mxu0
    %v263 = vadd.f32 %v224, %v262
    %v264 = vpop.f32.mrf.mxu0
    %265 = vdwg.mxu0
    %v267 = vunpack.c.l.b16 %v217
    %v268 = vpack.c.b16 %v267, %v267
    %269 = vrot.lane.b32.xlu0 %v268, 96
    %v270 = vpop.permute.xlu0 %269
    %v272 = vsel %vm230, %v218, 0
    %v275 = vsel %vm230, %v270, 0
    %277 = vmatpush.bf16.xpose.msra.mxu0 0
    %278 = vmatpush.bf16.xpose.msra.mxu0 0
    %279 = vmatpush.bf16.xpose.msra.mxu0 0
    %280 = vmatpush.bf16.xpose.msra.mxu0 0
    %281 = vmatpush.bf16.xpose.msra.mxu0 0
    %282 = vmatpush.bf16.xpose.msra.mxu0 0
    %283 = vmatpush.bf16.xpose.msra.mxu0 0
    %284 = vmatpush.bf16.xpose.msra.mxu0 %v275
    %285 = vmatmul.bf16.gmra.mxu0 %v272
    %v286 = vpop.f32.mrf.mxu0
    %v287 = vadd.f32 %v224, %v286
    %v288 = vpop.f32.mrf.mxu0
    %289 = vdwg.mxu0
    %v291 = vsel %vm230, %v219, 0
    %293 = vmatpush.bf16.xpose.msra.mxu0 0
    %294 = vmatpush.bf16.xpose.msra.mxu0 0
    %295 = vmatpush.bf16.xpose.msra.mxu0 0
    %296 = vmatpush.bf16.xpose.msra.mxu0 0
    %297 = vmatpush.bf16.xpose.msra.mxu0 0
    %298 = vmatpush.bf16.xpose.msra.mxu0 0
    %299 = vmatpush.bf16.xpose.msra.mxu0 0
    %300 = vmatpush.bf16.xpose.msra.mxu0 %v275
    %301 = vmatmul.bf16.gmra.mxu0 %v291
    %v302 = vpop.f32.mrf.mxu0
    %v303 = vadd.f32 %v224, %v302
    %v304 = vpop.f32.mrf.mxu0
    %305 = vdwg.mxu0
    %v307 = vunpack.c.l.b16 %v220
    %v308 = vpack.c.b16 %v307, %v307
    %309 = vrot.lane.b32.xlu0 %v308, 96
    %v310 = vpop.permute.xlu0 %309
    %v312 = vsel %vm230, %v220, 0
    %v315 = vsel %vm230, %v310, 0
    %317 = vmatpush.bf16.xpose.msra.mxu0 0
    %318 = vmatpush.bf16.xpose.msra.mxu0 0
    %319 = vmatpush.bf16.xpose.msra.mxu0 0
    %320 = vmatpush.bf16.xpose.msra.mxu0 0
    %321 = vmatpush.bf16.xpose.msra.mxu0 0
    %322 = vmatpush.bf16.xpose.msra.mxu0 0
    %323 = vmatpush.bf16.xpose.msra.mxu0 0
    %324 = vmatpush.bf16.xpose.msra.mxu0 %v315
    %325 = vmatmul.bf16.gmra.mxu0 %v312
    %v326 = vpop.f32.mrf.mxu0
    %v327 = vadd.f32 %v224, %v326
    %v328 = vpop.f32.mrf.mxu0
    %329 = vdwg.mxu0
    %v331 = vsel %vm230, %v221, 0
    %333 = vmatpush.bf16.xpose.msra.mxu0 0
    %334 = vmatpush.bf16.xpose.msra.mxu0 0
    %335 = vmatpush.bf16.xpose.msra.mxu0 0
    %336 = vmatpush.bf16.xpose.msra.mxu0 0
    %337 = vmatpush.bf16.xpose.msra.mxu0 0
    %338 = vmatpush.bf16.xpose.msra.mxu0 0
    %339 = vmatpush.bf16.xpose.msra.mxu0 0
    %340 = vmatpush.bf16.xpose.msra.mxu0 %v315
    %341 = vmatmul.bf16.gmra.mxu0 %v331
    %v342 = vpop.f32.mrf.mxu0
    %v343 = vadd.f32 %v224, %v342
    %v344 = vpop.f32.mrf.mxu0
    %345 = vdwg.mxu0
    %v347 = vunpack.c.l.b16 %v221
    %v348 = vpack.c.b16 %v347, %v347
    %349 = vrot.lane.b32.xlu0 %v348, 96
    %v350 = vpop.permute.xlu0 %349
    %v352 = vsel %vm230, %v222, 0
    %v355 = vsel %vm230, %v350, 0
    %357 = vmatpush.bf16.xpose.msra.mxu0 0
    %358 = vmatpush.bf16.xpose.msra.mxu0 0
    %359 = vmatpush.bf16.xpose.msra.mxu0 0
    %360 = vmatpush.bf16.xpose.msra.mxu0 0
    %361 = vmatpush.bf16.xpose.msra.mxu0 0
    %362 = vmatpush.bf16.xpose.msra.mxu0 0
    %363 = vmatpush.bf16.xpose.msra.mxu0 0
    %364 = vmatpush.bf16.xpose.msra.mxu0 %v355
    %365 = vmatmul.bf16.gmra.mxu0 %v352
    %v366 = vpop.f32.mrf.mxu0
    %v367 = vadd.f32 %v224, %v366
    %v368 = vpop.f32.mrf.mxu0
    %369 = vdwg.mxu0
    %v371 = vsel %vm230, %v223, 0
    %373 = vmatpush.bf16.xpose.msra.mxu0 0
    %374 = vmatpush.bf16.xpose.msra.mxu0 0
    %375 = vmatpush.bf16.xpose.msra.mxu0 0
    %376 = vmatpush.bf16.xpose.msra.mxu0 0
    %377 = vmatpush.bf16.xpose.msra.mxu0 0
    %378 = vmatpush.bf16.xpose.msra.mxu0 0
    %379 = vmatpush.bf16.xpose.msra.mxu0 0
    %380 = vmatpush.bf16.xpose.msra.mxu0 %v355
    %381 = vmatmul.bf16.gmra.mxu0 %v371
    %v382 = vpop.f32.mrf.mxu0
    %v383 = vadd.f32 %v224, %v382
    %v384 = vpop.f32.mrf.mxu0
    %385 = vdwg.mxu0
    %v386 = vsel %vm230, %v247, -inf
    %387 = vmax.xlane.f32.xlu0 %v386
    %v388 = vpop.xlane.xlu0 %387
    %v389 = vsel %vm230, %v263, -inf
    %390 = vmax.xlane.f32.xlu0 %v389
    %v391 = vpop.xlane.xlu0 %390
    %v392 = vsel %vm230, %v287, -inf
    %393 = vmax.xlane.f32.xlu0 %v392
    %v394 = vpop.xlane.xlu0 %393
    %v395 = vsel %vm230, %v303, -inf
    %396 = vmax.xlane.f32.xlu0 %v395
    %v397 = vpop.xlane.xlu0 %396
    %v398 = vsel %vm230, %v327, -inf
    %399 = vmax.xlane.f32.xlu0 %v398
    %v400 = vpop.xlane.xlu0 %399
    %v401 = vsel %vm230, %v343, -inf
    %402 = vmax.xlane.f32.xlu0 %v401
    %v403 = vpop.xlane.xlu0 %402
    %v404 = vsel %vm230, %v367, -inf
    %405 = vmax.xlane.f32.xlu0 %v404
    %v406 = vpop.xlane.xlu0 %405
    %v407 = vsel %vm230, %v383, -inf
    %408 = vmax.xlane.f32.xlu0 %v407
    %v409 = vpop.xlane.xlu0 %408
    %v410 = vsub.f32 %v247, %v388
    %v411 = vsub.f32 %v263, %v391
    %v412 = vsub.f32 %v287, %v394
    %v413 = vsub.f32 %v303, %v397
    %v414 = vsub.f32 %v327, %v400
    %v415 = vsub.f32 %v343, %v403
    %v416 = vsub.f32 %v367, %v406
    %v417 = vsub.f32 %v383, %v409
    %v418 = vmul.f32 %v410, 1.442695
    %v419 = vpow.pop %v418
    %v420 = vmul.f32 %v411, 1.442695
    %v421 = vpow.pop %v420
    %v422 = vmul.f32 %v412, 1.442695
    %v423 = vpow.pop %v422
    %v424 = vmul.f32 %v413, 1.442695
    %v425 = vpow.pop %v424
    %v426 = vmul.f32 %v414, 1.442695
    %v427 = vpow.pop %v426
    %v428 = vmul.f32 %v415, 1.442695
    %v429 = vpow.pop %v428
    %v430 = vmul.f32 %v416, 1.442695
    %v431 = vpow.pop %v430
    %v432 = vmul.f32 %v417, 1.442695
    %v433 = vpow.pop %v432
    %v434 = vsel %vm230, %v419, 0.0
    %435 = vadd.xlane.f32.xlu0 %v434
    %v436 = vpop.xlane.xlu0 %435
    %v437 = vsel %vm230, %v421, 0.0
    %438 = vadd.xlane.f32.xlu0 %v437
    %v439 = vpop.xlane.xlu0 %438
    %v440 = vsel %vm230, %v423, 0.0
    %441 = vadd.xlane.f32.xlu0 %v440
    %v442 = vpop.xlane.xlu0 %441
    %v443 = vsel %vm230, %v425, 0.0
    %444 = vadd.xlane.f32.xlu0 %v443
    %v445 = vpop.xlane.xlu0 %444
    %v446 = vsel %vm230, %v427, 0.0
    %447 = vadd.xlane.f32.xlu0 %v446
    %v448 = vpop.xlane.xlu0 %447
    %v449 = vsel %vm230, %v429, 0.0
    %450 = vadd.xlane.f32.xlu0 %v449
    %v451 = vpop.xlane.xlu0 %450
    %v452 = vsel %vm230, %v431, 0.0
    %453 = vadd.xlane.f32.xlu0 %v452
    %v454 = vpop.xlane.xlu0 %453
    %v455 = vsel %vm230, %v433, 0.0
    %456 = vadd.xlane.f32.xlu0 %v455
    %v457 = vpop.xlane.xlu0 %456
    %v458 = vrcp.pop %v436
    %v459 = vrcp.pop %v439
    %v460 = vrcp.pop %v442
    %v461 = vrcp.pop %v445
    %v462 = vrcp.pop %v448
    %v463 = vrcp.pop %v451
    %v464 = vrcp.pop %v454
    %v465 = vrcp.pop %v457
    %v466 = vmul.f32 %v419, %v458
    %v467 = vmul.f32 %v421, %v459
    %v468 = vmul.f32 %v423, %v460
    %v469 = vmul.f32 %v425, %v461
    %v470 = vmul.f32 %v427, %v462
    %v471 = vmul.f32 %v429, %v463
    %v472 = vmul.f32 %v431, %v464
    %v473 = vmul.f32 %v433, %v465
    %v474 = vpack.c.bf16 %v466, %v466
    %v475 = vpack.c.bf16 %v467, %v467
    %v476 = vpack.c.bf16 %v468, %v468
    %v477 = vpack.c.bf16 %v469, %v469
    %v478 = vpack.c.bf16 %v470, %v470
    %v479 = vpack.c.bf16 %v471, %v471
    %v480 = vpack.c.bf16 %v472, %v472
    %v481 = vpack.c.bf16 %v473, %v473
    %482 = vrot.lane.b32.xlu0 %v227, 80
    %v483 = vpop.permute.xlu0 %482
    %v485 = vsel %vm230, %v474, 0
    %vm487 = vcmask 1043456
    %v489 = vsel %vm487, %v483, 0
    %491 = vmatpush.bf16.msra.mxu0 0
    %492 = vmatpush.bf16.msra.mxu0 0
    %493 = vmatpush.bf16.msra.mxu0 0
    %494 = vmatpush.bf16.msra.mxu0 0
    %495 = vmatpush.bf16.msra.mxu0 0
    %496 = vmatpush.bf16.msra.mxu0 0
    %497 = vmatpush.bf16.msra.mxu0 0
    %498 = vmatpush.bf16.msra.mxu0 %v489
    %499 = vmatmul.bf16.gmra.mxu0 %v485
    %v500 = vpop.f32.mrf.mxu0
    %v501 = vadd.f32 0.0, %v500
    %v502 = vpop.f32.mrf.mxu0
    %503 = vdwg.mxu0
    %v505 = vsel %vm230, %v475, 0
    %507 = vmatpush.bf16.msra.mxu0 0
    %508 = vmatpush.bf16.msra.mxu0 0
    %509 = vmatpush.bf16.msra.mxu0 0
    %510 = vmatpush.bf16.msra.mxu0 0
    %511 = vmatpush.bf16.msra.mxu0 0
    %512 = vmatpush.bf16.msra.mxu0 0
    %513 = vmatpush.bf16.msra.mxu0 0
    %514 = vmatpush.bf16.msra.mxu0 %v489
    %515 = vmatmul.bf16.gmra.mxu0 %v505
    %v516 = vpop.f32.mrf.mxu0
    %v517 = vadd.f32 0.0, %v516
    %v518 = vpop.f32.mrf.mxu0
    %519 = vdwg.mxu0
    %520 = vrot.lane.b32.xlu0 %v268, 80
    %v521 = vpop.permute.xlu0 %520
    %v523 = vsel %vm230, %v476, 0
    %v526 = vsel %vm487, %v521, 0
    %528 = vmatpush.bf16.msra.mxu0 0
    %529 = vmatpush.bf16.msra.mxu0 0
    %530 = vmatpush.bf16.msra.mxu0 0
    %531 = vmatpush.bf16.msra.mxu0 0
    %532 = vmatpush.bf16.msra.mxu0 0
    %533 = vmatpush.bf16.msra.mxu0 0
    %534 = vmatpush.bf16.msra.mxu0 0
    %535 = vmatpush.bf16.msra.mxu0 %v526
    %536 = vmatmul.bf16.gmra.mxu0 %v523
    %v537 = vpop.f32.mrf.mxu0
    %v538 = vadd.f32 0.0, %v537
    %v539 = vpop.f32.mrf.mxu0
    %540 = vdwg.mxu0
    %v542 = vsel %vm230, %v477, 0
    %544 = vmatpush.bf16.msra.mxu0 0
    %545 = vmatpush.bf16.msra.mxu0 0
    %546 = vmatpush.bf16.msra.mxu0 0
    %547 = vmatpush.bf16.msra.mxu0 0
    %548 = vmatpush.bf16.msra.mxu0 0
    %549 = vmatpush.bf16.msra.mxu0 0
    %550 = vmatpush.bf16.msra.mxu0 0
    %551 = vmatpush.bf16.msra.mxu0 %v526
    %552 = vmatmul.bf16.gmra.mxu0 %v542
    %v553 = vpop.f32.mrf.mxu0
    %v554 = vadd.f32 0.0, %v553
    %v555 = vpop.f32.mrf.mxu0
    %556 = vdwg.mxu0
    %557 = vrot.lane.b32.xlu0 %v308, 80
    %v558 = vpop.permute.xlu0 %557
    %v560 = vsel %vm230, %v478, 0
    %v563 = vsel %vm487, %v558, 0
    %565 = vmatpush.bf16.msra.mxu0 0
    %566 = vmatpush.bf16.msra.mxu0 0
    %567 = vmatpush.bf16.msra.mxu0 0
    %568 = vmatpush.bf16.msra.mxu0 0
    %569 = vmatpush.bf16.msra.mxu0 0
    %570 = vmatpush.bf16.msra.mxu0 0
    %571 = vmatpush.bf16.msra.mxu0 0
    %572 = vmatpush.bf16.msra.mxu0 %v563
    %573 = vmatmul.bf16.gmra.mxu0 %v560
    %v574 = vpop.f32.mrf.mxu0
    %v575 = vadd.f32 0.0, %v574
    %v576 = vpop.f32.mrf.mxu0
    %577 = vdwg.mxu0
    %v579 = vsel %vm230, %v479, 0
    %581 = vmatpush.bf16.msra.mxu0 0
    %582 = vmatpush.bf16.msra.mxu0 0
    %583 = vmatpush.bf16.msra.mxu0 0
    %584 = vmatpush.bf16.msra.mxu0 0
    %585 = vmatpush.bf16.msra.mxu0 0
    %586 = vmatpush.bf16.msra.mxu0 0
    %587 = vmatpush.bf16.msra.mxu0 0
    %588 = vmatpush.bf16.msra.mxu0 %v563
    %589 = vmatmul.bf16.gmra.mxu0 %v579
    %v590 = vpop.f32.mrf.mxu0
    %v591 = vadd.f32 0.0, %v590
    %v592 = vpop.f32.mrf.mxu0
    %593 = vdwg.mxu0
    %594 = vrot.lane.b32.xlu0 %v348, 80
    %v595 = vpop.permute.xlu0 %594
    %v597 = vsel %vm230, %v480, 0
    %v600 = vsel %vm487, %v595, 0
    %602 = vmatpush.bf16.msra.mxu0 0
    %603 = vmatpush.bf16.msra.mxu0 0
    %604 = vmatpush.bf16.msra.mxu0 0
    %605 = vmatpush.bf16.msra.mxu0 0
    %606 = vmatpush.bf16.msra.mxu0 0
    %607 = vmatpush.bf16.msra.mxu0 0
    %608 = vmatpush.bf16.msra.mxu0 0
    %609 = vmatpush.bf16.msra.mxu0 %v600
    %610 = vmatmul.bf16.gmra.mxu0 %v597
    %v611 = vpop.f32.mrf.mxu0
    %v612 = vadd.f32 0.0, %v611
    %v613 = vpop.f32.mrf.mxu0
    %614 = vdwg.mxu0
    %v616 = vsel %vm230, %v481, 0
    %618 = vmatpush.bf16.msra.mxu0 0
    %619 = vmatpush.bf16.msra.mxu0 0
    %620 = vmatpush.bf16.msra.mxu0 0
    %621 = vmatpush.bf16.msra.mxu0 0
    %622 = vmatpush.bf16.msra.mxu0 0
    %623 = vmatpush.bf16.msra.mxu0 0
    %624 = vmatpush.bf16.msra.mxu0 0
    %625 = vmatpush.bf16.msra.mxu0 %v600
    %626 = vmatmul.bf16.gmra.mxu0 %v616
    %v627 = vpop.f32.mrf.mxu0
    %v628 = vadd.f32 0.0, %v627
    %v629 = vpop.f32.mrf.mxu0
    %630 = vdwg.mxu0
    %v631 = vld [vmem:[#allocation8] sm:$0xf]
    %v632 = vld [vmem:[#allocation8 + $0x4] sm:$0xf]
    %v633 = vld [vmem:[#allocation8 + $0x8] sm:$0xf]
    %v634 = vld [vmem:[#allocation8 + $0xc] sm:$0xf]
    %v635 = vpack.c.bf16 %v501, %v501
    %v636 = vpack.c.bf16 %v517, %v517
    %v637 = vpack.c.bf16 %v538, %v538
    %v638 = vpack.c.bf16 %v554, %v554
    %v640 = vsel %vm230, %v635, 0
    %v643 = vsel %vm487, %v631, 0
    %645 = vmatpush.bf16.msra.mxu0 0
    %646 = vmatpush.bf16.msra.mxu0 0
    %647 = vmatpush.bf16.msra.mxu0 0
    %648 = vmatpush.bf16.msra.mxu0 0
    %649 = vmatpush.bf16.msra.mxu0 0
    %650 = vmatpush.bf16.msra.mxu0 0
    %651 = vmatpush.bf16.msra.mxu0 0
    %652 = vmatpush.bf16.msra.mxu0 %v643
    %653 = vmatmul.bf16.gmra.mxu0 %v640
    %v654 = vpop.f32.mrf.mxu0
    %v655 = vadd.f32 0.0, %v654
    %v656 = vpop.f32.mrf.mxu0
    %657 = vdwg.mxu0
    %v659 = vsel %vm230, %v636, 0
    %v662 = vsel %vm487, %v632, 0
    %664 = vmatpush.bf16.msra.mxu0 0
    %665 = vmatpush.bf16.msra.mxu0 0
    %666 = vmatpush.bf16.msra.mxu0 0
    %667 = vmatpush.bf16.msra.mxu0 0
    %668 = vmatpush.bf16.msra.mxu0 0
    %669 = vmatpush.bf16.msra.mxu0 0
    %670 = vmatpush.bf16.msra.mxu0 0
    %671 = vmatpush.bf16.msra.mxu0 %v662
    %672 = vmatmul.bf16.gmra.mxu0 %v659
    %v673 = vpop.f32.mrf.mxu0
    %v674 = vadd.f32 0.0, %v673
    %v675 = vpop.f32.mrf.mxu0
    %676 = vdwg.mxu0
    %v678 = vsel %vm230, %v637, 0
    %v681 = vsel %vm487, %v633, 0
    %683 = vmatpush.bf16.msra.mxu0 0
    %684 = vmatpush.bf16.msra.mxu0 0
    %685 = vmatpush.bf16.msra.mxu0 0
    %686 = vmatpush.bf16.msra.mxu0 0
    %687 = vmatpush.bf16.msra.mxu0 0
    %688 = vmatpush.bf16.msra.mxu0 0
    %689 = vmatpush.bf16.msra.mxu0 0
    %690 = vmatpush.bf16.msra.mxu0 %v681
    %691 = vmatmul.bf16.gmra.mxu0 %v678
    %v692 = vpop.f32.mrf.mxu0
    %v693 = vadd.f32 0.0, %v692
    %v694 = vpop.f32.mrf.mxu0
    %695 = vdwg.mxu0
    %v697 = vsel %vm230, %v638, 0
    %v700 = vsel %vm487, %v634, 0
    %702 = vmatpush.bf16.msra.mxu0 0
    %703 = vmatpush.bf16.msra.mxu0 0
    %704 = vmatpush.bf16.msra.mxu0 0
    %705 = vmatpush.bf16.msra.mxu0 0
    %706 = vmatpush.bf16.msra.mxu0 0
    %707 = vmatpush.bf16.msra.mxu0 0
    %708 = vmatpush.bf16.msra.mxu0 0
    %709 = vmatpush.bf16.msra.mxu0 %v700
    %710 = vmatmul.bf16.gmra.mxu0 %v697
    %v711 = vpop.f32.mrf.mxu0
    %v712 = vadd.f32 0.0, %v711
    %v713 = vpop.f32.mrf.mxu0
    %714 = vdwg.mxu0
    %v715 = vsel %vm96, %v655, 0.0
    %v716 = vsel %vm96, %v674, 0.0
    %v717 = vadd.f32 %v715, %v716
    %v718 = vsel %vm96, %v693, 0.0
    %v719 = vadd.f32 %v717, %v718
    %v720 = vsel %vm96, %v712, 0.0
    %v721 = vadd.f32 %v719, %v720
    %v722 = vpack.c.bf16 %v575, %v575
    %v723 = vpack.c.bf16 %v591, %v591
    %v724 = vpack.c.bf16 %v612, %v612
    %v725 = vpack.c.bf16 %v628, %v628
    %v727 = vsel %vm230, %v722, 0
    %729 = vmatpush.bf16.msra.mxu0 0
    %730 = vmatpush.bf16.msra.mxu0 0
    %731 = vmatpush.bf16.msra.mxu0 0
    %732 = vmatpush.bf16.msra.mxu0 0
    %733 = vmatpush.bf16.msra.mxu0 0
    %734 = vmatpush.bf16.msra.mxu0 0
    %735 = vmatpush.bf16.msra.mxu0 0
    %736 = vmatpush.bf16.msra.mxu0 %v643
    %737 = vmatmul.bf16.gmra.mxu0 %v727
    %v738 = vpop.f32.mrf.mxu0
    %v739 = vadd.f32 0.0, %v738
    %v740 = vpop.f32.mrf.mxu0
    %741 = vdwg.mxu0
    %v743 = vsel %vm230, %v723, 0
    %745 = vmatpush.bf16.msra.mxu0 0
    %746 = vmatpush.bf16.msra.mxu0 0
    %747 = vmatpush.bf16.msra.mxu0 0
    %748 = vmatpush.bf16.msra.mxu0 0
    %749 = vmatpush.bf16.msra.mxu0 0
    %750 = vmatpush.bf16.msra.mxu0 0
    %751 = vmatpush.bf16.msra.mxu0 0
    %752 = vmatpush.bf16.msra.mxu0 %v662
    %753 = vmatmul.bf16.gmra.mxu0 %v743
    %v754 = vpop.f32.mrf.mxu0
    %v755 = vadd.f32 0.0, %v754
    %v756 = vpop.f32.mrf.mxu0
    %757 = vdwg.mxu0
    %v759 = vsel %vm230, %v724, 0
    %761 = vmatpush.bf16.msra.mxu0 0
    %762 = vmatpush.bf16.msra.mxu0 0
    %763 = vmatpush.bf16.msra.mxu0 0
    %764 = vmatpush.bf16.msra.mxu0 0
    %765 = vmatpush.bf16.msra.mxu0 0
    %766 = vmatpush.bf16.msra.mxu0 0
    %767 = vmatpush.bf16.msra.mxu0 0
    %768 = vmatpush.bf16.msra.mxu0 %v681
    %769 = vmatmul.bf16.gmra.mxu0 %v759
    %v770 = vpop.f32.mrf.mxu0
    %v771 = vadd.f32 0.0, %v770
    %v772 = vpop.f32.mrf.mxu0
    %773 = vdwg.mxu0
    %v775 = vsel %vm230, %v725, 0
    %777 = vmatpush.bf16.msra.mxu0 0
    %778 = vmatpush.bf16.msra.mxu0 0
    %779 = vmatpush.bf16.msra.mxu0 0
    %780 = vmatpush.bf16.msra.mxu0 0
    %781 = vmatpush.bf16.msra.mxu0 0
    %782 = vmatpush.bf16.msra.mxu0 0
    %783 = vmatpush.bf16.msra.mxu0 0
    %784 = vmatpush.bf16.msra.mxu0 %v700
    %785 = vmatmul.bf16.gmra.mxu0 %v775
    %v786 = vpop.f32.mrf.mxu0
    %v787 = vadd.f32 0.0, %v786
    %v788 = vpop.f32.mrf.mxu0
    %789 = vdwg.mxu0
    %v790 = vsel %vm96, %v739, 0.0
    %v791 = vsel %vm96, %v755, 0.0
    %v792 = vadd.f32 %v790, %v791
    %v793 = vsel %vm96, %v771, 0.0
    %v794 = vadd.f32 %v792, %v793
    %v795 = vsel %vm96, %v787, 0.0
    %v796 = vadd.f32 %v794, %v795
    %v797 = vadd.f32 %v92, %v721
    %v798 = vadd.f32 %v93, %v796
    %v799 = vmul.f32 %v797, %v797
    %v800 = vmul.f32 %v798, %v798
    %v801 = vsel %vm96, %v799, 0.0
    %802 = vadd.xlane.f32.xlu0 %v801
    %v803 = vpop.xlane.xlu0 %802
    %v804 = vsel %vm96, %v800, 0.0
    %805 = vadd.xlane.f32.xlu0 %v804
    %v806 = vpop.xlane.xlu0 %805
    %v807 = vmul.f32 %v803, %v109
    %v808 = vmul.f32 %v806, %v109
    %v809 = vadd.f32 %v807, 1e-05
    %v810 = vadd.f32 %v808, 1e-05
    %v811 = vrsqrt.pop %v809
    %v812 = vmul.f32 %v811, %v809
    %v813 = vmul.f32 %v812, %v811
    %v814 = vmul.f32 0.5, %v813
    %v815 = vsub.f32 1.5, %v814
    %v816 = vmul.f32 %v811, %v815
    %vm817 = vweird.f32 %v809
    %vm818 = vweird.f32 %v811
    %vm819 = vmor %vm817, %vm818
    %v820 = vsel %vm819, %v811, %v816
    %v821 = vrsqrt.pop %v810
    %v822 = vmul.f32 %v821, %v810
    %v823 = vmul.f32 %v822, %v821
    %v824 = vmul.f32 0.5, %v823
    %v825 = vsub.f32 1.5, %v824
    %v826 = vmul.f32 %v821, %v825
    %vm827 = vweird.f32 %v810
    %vm828 = vweird.f32 %v821
    %vm829 = vmor %vm827, %vm828
    %v830 = vsel %vm829, %v821, %v826
    %v831 = vmul.f32 %v797, %v820
    %v832 = vmul.f32 %v798, %v830
    %v833 = vpack.c.bf16 %v832, %v831
    %v834 = vld [vmem:[%s6] sm:$0xff]
    %v835 = vld [vmem:[%s6 + $0x8] sm:$0xff]
    %v836 = vld [vmem:[%s6 + $0x10] sm:$0xff]
    %v837 = vld [vmem:[%s6 + $0x18] sm:$0xff]
    %v842 = vunpack.c.l.b16 %v834
    %v843 = vunpack.c.h.b16 %v834
    %v844 = vunpack.c.l.b16 %v835
    %v845 = vunpack.c.h.b16 %v835
    %v846 = vunpack.c.l.b16 %v836
    %v847 = vunpack.c.h.b16 %v836
    %v848 = vunpack.c.l.b16 %v837
    %v849 = vunpack.c.h.b16 %v837
    %v850 = vpack.c.b16 %v844, %v842
    %v851 = vpack.c.b16 %v845, %v843
    %v852 = vpack.c.b16 %v848, %v846
    %v853 = vpack.c.b16 %v849, %v847
    %v859 = vsel %vm96, %v833, 0
    %861 = vmatpush.bf16.msra.mxu0 0
    %862 = vmatpush.bf16.msra.mxu0 0
    %863 = vmatpush.bf16.msra.mxu0 0
    %864 = vmatpush.bf16.msra.mxu0 0
    %865 = vmatpush.bf16.msra.mxu0 0
    %866 = vmatpush.bf16.msra.mxu0 0
    %867 = vmatpush.bf16.msra.mxu0 %v852
    %868 = vmatpush.bf16.msra.mxu0 %v850
    %869 = vmatmul.bf16.gmra.mxu0 %v859
    %v870 = vpop.f32.mrf.mxu0
    %v871 = vadd.f32 0.0, %v870
    %v872 = vpop.f32.mrf.mxu0
    %v873 = vadd.f32 0.0, %v872
    %874 = vdwg.mxu0
    %875 = vmatpush.bf16.msra.mxu0 0
    %876 = vmatpush.bf16.msra.mxu0 0
    %877 = vmatpush.bf16.msra.mxu0 0
    %878 = vmatpush.bf16.msra.mxu0 0
    %879 = vmatpush.bf16.msra.mxu0 0
    %880 = vmatpush.bf16.msra.mxu0 0
    %881 = vmatpush.bf16.msra.mxu0 %v853
    %882 = vmatpush.bf16.msra.mxu0 %v851
    %883 = vmatmul.bf16.gmra.mxu0 %v859
    %v884 = vpop.f32.mrf.mxu0
    %v885 = vadd.f32 0.0, %v884
    %v886 = vpop.f32.mrf.mxu0
    %v887 = vadd.f32 0.0, %v886
    %888 = vdwg.mxu0
    %v889 = vxor.u32 %v871, 2147483648
    %v890 = vxor.u32 %v873, 2147483648
    %v891 = vmul.f32 %v889, 1.442695
    %v892 = vpow.pop %v891
    %v893 = vmul.f32 %v890, 1.442695
    %v894 = vpow.pop %v893
    %v895 = vadd.f32 %v892, 1.0
    %v896 = vadd.f32 %v894, 1.0
    %v897 = vrcp.pop %v895
    %v898 = vmul.f32 %v895, %v897
    %v899 = vsub.f32 1.0, %v898
    %v900 = vmul.f32 %v897, %v899
    %v901 = vadd.f32 %v897, %v900
    %vm902 = vweird.f32 %v895
    %vm903 = vweird.f32 %v897
    %vm904 = vmor %vm902, %vm903
    %v905 = vsel %vm904, %v897, %v901
    %v906 = vand.u32 2147483647, %v895
    %vm907 = vcmp.eq.f32.partialorder %v906, 8.507059e+37
    %v908 = vand.u32 %v895, 2147483648
    %v909 = vor.u32 1.1754944e-38, %v908
    %v910 = vsel %vm907, %v909, %v905
    %v911 = vmul.f32 1.0, %v910
    %v912 = vrcp.pop %v896
    %v913 = vmul.f32 %v896, %v912
    %v914 = vsub.f32 1.0, %v913
    %v915 = vmul.f32 %v912, %v914
    %v916 = vadd.f32 %v912, %v915
    %vm917 = vweird.f32 %v896
    %vm918 = vweird.f32 %v912
    %vm919 = vmor %vm917, %vm918
    %v920 = vsel %vm919, %v912, %v916
    %v921 = vand.u32 2147483647, %v896
    %vm922 = vcmp.eq.f32.partialorder %v921, 8.507059e+37
    %v923 = vand.u32 %v896, 2147483648
    %v924 = vor.u32 1.1754944e-38, %v923
    %v925 = vsel %vm922, %v924, %v920
    %v926 = vmul.f32 1.0, %v925
    %v927 = vmul.f32 %v871, %v911
    %v928 = vmul.f32 %v873, %v926
    %v929 = vmul.f32 %v927, %v885
    %v930 = vmul.f32 %v928, %v887
    %v931 = vpack.c.bf16 %v930, %v929
    %v932 = vld [vmem:[%s7] sm:$0xf]
    %v933 = vld [vmem:[%s7 + $0x4] sm:$0xf]
    %v934 = vld [vmem:[%s7 + $0x8] sm:$0xf]
    %v935 = vld [vmem:[%s7 + $0xc] sm:$0xf]
    %v936 = vld [vmem:[%s7 + $0x10] sm:$0xf]
    %v937 = vld [vmem:[%s7 + $0x14] sm:$0xf]
    %v938 = vld [vmem:[%s7 + $0x18] sm:$0xf]
    %v939 = vld [vmem:[%s7 + $0x1c] sm:$0xf]
    %v940 = vld [vmem:[%s7 + $0x20] sm:$0xf]
    %v941 = vld [vmem:[%s7 + $0x24] sm:$0xf]
    %v942 = vld [vmem:[%s7 + $0x28] sm:$0xf]
    %v943 = vld [vmem:[%s7 + $0x2c] sm:$0xf]
    %v956 = vunpack.c.l.b16 %v932
    %v957 = vunpack.c.l.b16 %v933
    %v958 = vunpack.c.l.b16 %v934
    %v959 = vunpack.c.l.b16 %v935
    %v960 = vunpack.c.l.b16 %v936
    %v961 = vunpack.c.l.b16 %v937
    %v962 = vunpack.c.l.b16 %v938
    %v963 = vunpack.c.l.b16 %v939
    %v964 = vunpack.c.l.b16 %v940
    %v965 = vunpack.c.l.b16 %v941
    %v966 = vunpack.c.l.b16 %v942
    %v967 = vunpack.c.l.b16 %v943
    %v968 = vpack.c.b16 %v957, %v956
    %v969 = vpack.c.b16 %v959, %v958
    %v970 = vpack.c.b16 %v961, %v960
    %v971 = vpack.c.b16 %v963, %v962
    %v972 = vpack.c.b16 %v965, %v964
    %v973 = vpack.c.b16 %v967, %v966
    %vm980 = vcmask 785408
    %v982 = vsel %vm980, %v931, 0
    %984 = vmatpush.bf16.msra.mxu0 0
    %985 = vmatpush.bf16.msra.mxu0 0
    %986 = vmatpush.bf16.msra.mxu0 %v973
    %987 = vmatpush.bf16.msra.mxu0 %v972
    %988 = vmatpush.bf16.msra.mxu0 %v971
    %989 = vmatpush.bf16.msra.mxu0 %v970
    %990 = vmatpush.bf16.msra.mxu0 %v969
    %991 = vmatpush.bf16.msra.mxu0 %v968
    %992 = vmatmul.bf16.gmra.mxu0 %v982
    %v993 = vpop.f32.mrf.mxu0
    %v994 = vadd.f32 0.0, %v993
    %v995 = vpop.f32.mrf.mxu0
    %v996 = vadd.f32 0.0, %v995
    %997 = vdwg.mxu0
    %v998 = vadd.f32 %v797, %v994
    %v999 = vadd.f32 %v798, %v996
    %1000 = vst.msk [vmem:[#allocation10] sm:$0xff] %vm96, %v998
    %1001 = vst.msk [vmem:[#allocation10 + $0x8] sm:$0xff] %vm96, %v999
    // Predicated region
    $region50: #{transformer_block_pallas.1} parent=1 // pred_check
      _
    $region51: #{transformer_block_pallas.1} parent=1 // pred_check_branch
      %1003 = sbr.rel (0) target = $region53
    $region52: #{transformer_block_pallas.1} parent=1 // pred_region
      %1005 = vsyncadd [#allocation4], 0
      %s1006 = sshll.u32 [#allocation10], 4
      %s1007 = int_to_ptr.vmem [resolvable:$true] %s1006
      %s1008 = sshll.u32 %s8, 4
      %s1009 = int_to_ptr.hbm [resolvable:$true] %s1008
      %1014 = dma.vmem_to_hbm [thread:$0]  %s1007, 256, %s1009, [#allocation4], 128, 128, 8
    $region53: #{transformer_block_pallas.1} parent=1 // pred_fallthru
      _
    // Predicated region
    $region54: #{transformer_block_pallas.1} parent=1 // pred_check
      _
    $region55: #{transformer_block_pallas.1} parent=1 // pred_check_branch
      %1016 = sbr.rel (0) target = $region57
    $region56: #{transformer_block_pallas.1} parent=1 // pred_region
      %1018 = dma.done [#allocation4], 256
    $region57: #{transformer_block_pallas.1} parent=1 // pred_fallthru
      _
    %1019 = vsyncpa [#allocation3], 1
    %1020 = vsyncpa [#allocation6], 1
    %1021 = vsyncpa [#allocation9], 1
    %1022 = vsyncpa [#allocation4], 1

</llo_original>
